<compile_context>
chip_gen: v5e
topology: v5e:2x2
jax: 0.10.0
libtpu: 0.0.40
codegen_flags: <defaults>
</compile_context>

<pallas_src>
import functools

import jax
import jax.numpy as jnp
import numpy as np
from jax.experimental import pallas as pl
from jax.experimental.pallas import tpu as pltpu


def _num_grid_steps(B, N):
    """Generation-aware grid split.

    Multi-TensorCore chips (v7x, and megacore v4/v5p) benefit from 2 parallel
    grid steps; single-TC chips (v5e/v6e) just pay ~0.35 us/step, so use 1.
    The 2-step path is only taken when the per-step lane width (B/2 * N) is a
    multiple of 128 so every BlockSpec stays Mosaic-legal and lane-dense.
    """
    try:
        kind = jax.devices()[0].device_kind.lower()
    except Exception:  # pragma: no cover - defensive
        kind = ""
    multi_core = any(tag in kind for tag in ("v7", "v5p", "v4"))
    if multi_core and B % 2 == 0 and ((B // 2) * N) % 128 == 0:
        return 2
    return 1


def _make_mgr_kernel(Bt, N, H, K, V, C_in, compute_dtype):
    """Kernel specialized on static sizes: Bt batch segments of N lanes each."""
    HK = H * K
    C_out = H * V
    BtN = Bt * N

    def kernel(x_ref, wqkv_ref, a2_ref, ws_ref, bout_ref, o_ref):
        def mm(a, b, dims=(((1,), (0,)), ((), ()))):
            # MXU matmul: feed `compute_dtype` (bf16 on v6e/v7x), accumulate f32.
            return jax.lax.dot_general(
                a.astype(compute_dtype), b.astype(compute_dtype),
                dimension_numbers=dims, preferred_element_type=jnp.float32)

        x_aug = x_ref[...]                          # [C_in+1, Bt*N] f32 (ones row last)

        # (1) Fused q/k/v 1x1 convs + folded BN scales + biases:
        #     ONE MXU matmul over the whole lane-flattened batch tile
        #     (bias column of wqkv hits the ones row of x_aug).
        qkv = mm(wqkv_ref[...], x_aug)              # [HK+K+V, Bt*N] f32
        q = qkv[:HK, :]                             # [HK, Bt*N]
        k_lin = qkv[HK:HK + K, :]                   # [K,  Bt*N]
        v = qkv[HK + K:, :]                         # [V,  Bt*N]

        # (2) Graph term g[(k,w), :] = sum_u A[w,u,k] * value[u,:]
        #     — batch already flattened along lanes, one MXU matmul.
        g = mm(a2_ref[...], v)                      # [K*V, Bt*N]

        # (3) Per batch segment (Bt is 1-2 after the generation-aware split, so
        #     this short static unroll keeps only a handful of vregs live):
        #     softmax of the key over its own N lanes, kv outer product on the
        #     MXU (dot_general contracts the N axes directly — no .T relayout),
        #     and per-head Yc = kvT @ q_h.  kvT differs per batch element, so
        #     this part cannot be lane-merged.  Blocks are assembled in
        #     registers (no VMEM scratch round trip).
        yc_cols = []
        for b in range(Bt):
            sl = slice(b * N, (b + 1) * N)
            kb = k_lin[:, sl]                                           # [K, N]
            kb = jnp.exp(kb - jnp.max(kb, axis=-1, keepdims=True))
            kb = kb / jnp.sum(kb, axis=-1, keepdims=True)               # exact softmax
            vb = v[:, sl]                                               # [V, N]
            kvT = mm(vb, kb, dims=(((1,), (1,)), ((), ())))             # [V, K]
            qb = q[:, sl]                                               # [HK, N]
            yc_cols.append(jnp.concatenate(
                [mm(kvT, qb[h * K:(h + 1) * K, :]) for h in range(H)],
                axis=0))                                                # [C_out, N]
        y = yc_cols[0] if Bt == 1 else jnp.concatenate(yc_cols, axis=1)  # [C_out, Bt*N]

        # (4) Yp accumulation merged across heads: per k, ONE full-width
        #     [C_out, Bt*N] VPU multiply-add — q rows repeated V x along
        #     sublanes times the head-tiled relu(g + v) slab.
        for kk in range(K):
            gk = jnp.maximum(g[kk * V:(kk + 1) * V, :] + v, 0.0)        # [V, Bt*N]
            grep = jnp.tile(gk, (H, 1))                                 # [C_out, Bt*N]
            qrep = jnp.concatenate(
                [jnp.broadcast_to(q[h * K + kk:h * K + kk + 1, :], (V, BtN))
                 for h in range(H)], axis=0)                            # [C_out, Bt*N]
            y = y + qrep * grep

        # (5) Skip 1x1 conv (+ folded blocker BN) over the whole tile, bias,
        #     residual ReLU — lane-dense [C_out, Bt*N] store.
        s = mm(ws_ref[...], y) + bout_ref[...]                          # [C_out, Bt*N]
        o_ref[...] = jnp.maximum(s + x_aug[:C_in, :], 0.0)

    return kernel


def mgr_forward_pallas(x, params, *, heads, dim_k, compute_dtype=jnp.bfloat16):
    B, C_in, N = x.shape
    C_out = params["ws"].shape[0]
    assert C_in == C_out, "residual add requires C_in == C_out"
    H, K = heads, dim_k
    V = C_out // H
    HK = H * K
    HKV = HK + K + V

    # ---- host-side (free) prep: fold BN scales, fuse QKV + bias column ----
    wq = params["wq"] * params["scale_q"][:, None]          # norm_q folded into Wq
    wk = params["wk"]
    wv = params["wv"] * params["scale_v"][:, None]          # norm_v folded into Wv
    b_qkv = jnp.concatenate(
        [params["bias_q"], jnp.zeros((K,), jnp.float32), params["bias_v"]], axis=0)
    wqkv = jnp.concatenate(
        [jnp.concatenate([wq, wk, wv], axis=0), b_qkv[:, None]],
        axis=1).astype(compute_dtype)                        # [HKV, C_in+1]

    ws = (params["ws"] * params["scale_b"][:, None]).astype(compute_dtype)   # blocker folded
    b_out = (params["scale_b"] * params["bs"]
             + params["bias_b"])[:, None].astype(jnp.float32)                # [C_out, 1]

    # A2[(k, w), v] = A[w, v, k]  so that  g = A2 @ value  keeps N in lanes.
    a2 = jnp.transpose(params["A"], (2, 0, 1)).reshape(K * V, V).astype(compute_dtype)

    # Lane-flatten the batch: [B, C_in, N] -> [C_in, B*N]; append a ones row so
    # the q/k/v biases are folded into the single MXU matmul.
    x_flat = jnp.transpose(x, (1, 0, 2)).reshape(C_in, B * N)
    x_aug = jnp.concatenate([x_flat, jnp.ones((1, B * N), x.dtype)], axis=0)  # [C_in+1, B*N]

    G = _num_grid_steps(B, N)       # 1 on v5e/v6e; 2 on multi-TC chips when legal
    Bt = B // G
    BtN = Bt * N

    kernel = _make_mgr_kernel(Bt, N, H, K, V, C_in, compute_dtype)

    # Note: for large N this would grow an N-tile grid axis (lane tiles that are
    # multiples of 128) — on v7x halve the tile vs the v6e choice and re-check
    # vmem_limit_bytes (64 MiB physical VMEM vs 128 MiB, and BlockSpec
    # double-buffers both the input and output slabs).  At these shapes a single
    # [C, B*N] slab fits trivially everywhere.
    grid_spec = pltpu.PrefetchScalarGridSpec(
        num_scalar_prefetch=0,
        grid=(G,),
        in_specs=[
            pl.BlockSpec((C_in + 1, BtN), lambda i: (0, i)),   # x (lane-flattened + ones row)
            pl.BlockSpec((HKV, C_in + 1), lambda i: (0, 0)),   # fused Wq|Wk|Wv (+bias col)
            pl.BlockSpec((K * V, V), lambda i: (0, 0)),        # A2
            pl.BlockSpec((C_out, C_out), lambda i: (0, 0)),    # folded skip W
            pl.BlockSpec((C_out, 1), lambda i: (0, 0)),        # folded skip/blocker bias
        ],
        out_specs=pl.BlockSpec((C_out, BtN), lambda i: (0, i)),  # lane-dense output slab
    )

    out_flat = pl.pallas_call(
        kernel,
        out_shape=jax.ShapeDtypeStruct((C_out, B * N), jnp.float32),
        grid_spec=grid_spec,
        compiler_params=pltpu.CompilerParams(
            dimension_semantics=("parallel",),
            vmem_limit_bytes=32 * 1024 * 1024,
        ),
    )(x_aug, wqkv, a2, ws, b_out)

    # [C_out, B*N] -> [B, C_out, N]
    return jnp.transpose(out_flat.reshape(C_out, B, N), (1, 0, 2))


def mgr_forward_reference(x, params, *, heads, dim_k):
    """Pure-JAX f32 reference mirroring the PyTorch forward (eval-mode BN)."""
    B, C_in, N = x.shape
    C_out = params["ws"].shape[0]
    H, K = heads, dim_k
    V = C_out // H

    q = jnp.einsum("oc,bcn->bon", params["wq"], x)
    k = jnp.einsum("oc,bcn->bon", params["wk"], x)
    v = jnp.einsum("oc,bcn->bon", params["wv"], x)
    q = q * params["scale_q"][None, :, None] + params["bias_q"][None, :, None]
    v = v * params["scale_v"][None, :, None] + params["bias_v"][None, :, None]
    k = jax.nn.softmax(k, axis=-1)

    qh = q.reshape(B, H, K, N)
    kv = jnp.einsum("bkn,bvn->bkv", k, v)
    yc = jnp.einsum("bhkn,bkv->bnhv", qh, kv)
    g = jnp.einsum("bvn,wvk->bnkw", v, params["A"])
    g = jax.nn.relu(g + jnp.transpose(v, (0, 2, 1))[:, :, None, :])
    yp = jnp.einsum("bhkn,bnkv->bnhv", qh, g)
    out = (yc + yp).reshape(B, N, H * V)
    out = jnp.transpose(out, (0, 2, 1))                     # [B, C_out, N]
    out = jnp.einsum("oc,bcn->bon", params["ws"], out) + params["bs"][None, :, None]
    out = out * params["scale_b"][None, :, None] + params["bias_b"][None, :, None]
    return jax.nn.relu(out + x)


def init_params(key, C_in, C_out, dim_k, heads):
    H, K = heads, dim_k
    V = C_out // H
    HK = H * K
    ks = jax.random.split(key, 12)
    eps = 1e-5

    def bn(kg, kb, c):
        gamma = 0.5 + jax.random.uniform(kg, (c,), jnp.float32)
        beta = 0.1 * jax.random.normal(kb, (c,), jnp.float32)
        # running_mean = 0, running_var = 1 (fresh module, eval mode)
        scale = gamma / jnp.sqrt(1.0 + eps)
        bias = beta
        return scale, bias

    sq, bq = bn(ks[3], ks[4], HK)
    sv, bv = bn(ks[5], ks[6], V)
    sb, bb = bn(ks[7], ks[8], C_out)

    params = {
        "wq": jax.random.normal(ks[0], (HK, C_in), jnp.float32) / np.sqrt(C_in),
        "wk": jax.random.normal(ks[1], (K, C_in), jnp.float32) / np.sqrt(C_in),
        "wv": jax.random.normal(ks[2], (V, C_in), jnp.float32) / np.sqrt(C_in),
        "scale_q": sq, "bias_q": bq,
        "scale_v": sv, "bias_v": bv,
        "scale_b": sb, "bias_b": bb,
        "A": 0.1 * jax.random.normal(ks[9], (V, V, K), jnp.float32),
        "ws": jax.random.normal(ks[10], (C_out, C_out), jnp.float32) / np.sqrt(C_out),
        "bs": 0.1 * jax.random.normal(ks[11], (C_out,), jnp.float32),
    }
    return params


if __name__ == "__main__":
    # small shapes: residual requires C_in == C_out
    B, C_in, C_out, N = 2, 32, 32, 16
    heads, dim_k = 4, 8                       # dim_v = C_out // heads = 8

    key = jax.random.PRNGKey(0)
    kx, kp = jax.random.split(key)
    x = jax.random.normal(kx, (B, C_in, N), jnp.float32)
    params = init_params(kp, C_in, C_out, dim_k, heads)

    ref = mgr_forward_reference(x, params, heads=heads, dim_k=dim_k)

    # 1) f32-fed MXU path: structural check vs the PyTorch-mirroring reference.
    fwd_f32 = jax.jit(functools.partial(mgr_forward_pallas, heads=heads,
                                        dim_k=dim_k, compute_dtype=jnp.float32))
    out_f32 = jax.block_until_ready(fwd_f32(x, params))
    np.testing.assert_allclose(np.asarray(out_f32), np.asarray(ref),
                               rtol=1e-2, atol=2e-2)

    # 2) bf16-fed MXU path (perf default on v6e/v7x; f32 accumulation):
    #    aggregate relative error check (bf16 rounding of matmul feeds and the
    #    folded bias column makes elementwise tails noisy; the kernel structure
    #    is identical to the f32 path above).
    fwd_bf16 = jax.jit(functools.partial(mgr_forward_pallas, heads=heads,
                                         dim_k=dim_k, compute_dtype=jnp.bfloat16))
    out_bf16 = jax.block_until_ready(fwd_bf16(x, params))
    rel = (np.linalg.norm(np.asarray(out_bf16) - np.asarray(ref))
           / np.linalg.norm(np.asarray(ref)))
    assert rel < 3e-2, f"bf16 MXU path relative L2 error too high: {rel}"

    print("KERNEL_OK")
</pallas_src>

<mosaic_0001>
module attributes {stable_mosaic.version = 11 : i64} {
  func.func @kernel(%arg0: i32, %arg1: memref<33x32xf32, #tpu.memory_space<vmem>>, %arg2: memref<48x33xf32, #tpu.memory_space<vmem>>, %arg3: memref<64x8xf32, #tpu.memory_space<vmem>>, %arg4: memref<32x32xf32, #tpu.memory_space<vmem>>, %arg5: memref<32x1xf32, #tpu.memory_space<vmem>>, %arg6: memref<32x32xf32, #tpu.memory_space<vmem>>) attributes {dimension_semantics = [#tpu.dimension_semantics<parallel>], iteration_bounds = array<i64: 1>, scalar_prefetch = 0 : i64, scratch_operands = 0 : i64, tpu.core_type = #tpu.core_type<tc>, window_params = [{transform_indices = @transform_0, window_bounds = array<i64: 33, 32>}, {pipeline_mode = #tpu.pipeline_mode<synchronous>, transform_indices = @transform_1, window_bounds = array<i64: 48, 33>}, {pipeline_mode = #tpu.pipeline_mode<synchronous>, transform_indices = @transform_2, window_bounds = array<i64: 64, 8>}, {pipeline_mode = #tpu.pipeline_mode<synchronous>, transform_indices = @transform_3, window_bounds = array<i64: 32, 32>}, {pipeline_mode = #tpu.pipeline_mode<synchronous>, transform_indices = @transform_4, window_bounds = array<i64: 32, 1>}, {transform_indices = @transform_5, window_bounds = array<i64: 32, 32>}]} {
    %c0 = arith.constant 0 : index
    %c0_0 = arith.constant 0 : index
    %0 = vector.load %arg1[%c0, %c0_0] : memref<33x32xf32, #tpu.memory_space<vmem>>, vector<33x32xf32>
    %c0_1 = arith.constant 0 : index
    %c0_2 = arith.constant 0 : index
    %1 = vector.load %arg2[%c0_1, %c0_2] : memref<48x33xf32, #tpu.memory_space<vmem>>, vector<48x33xf32>
    %cst = arith.constant dense<0.000000e+00> : vector<48x32xf32>
    %2 = tpu.matmul %1, %0, %cst {dimension_numbers = #tpu.dot_dimension_numbers<[1], [0], [0], [1], [0, 0, 1, 1], [], []>} : vector<48x33xf32>, vector<33x32xf32>, vector<48x32xf32> -> vector<48x32xf32>
    %3 = vector.extract_strided_slice %2 {offsets = [0, 0], sizes = [32, 32], strides = [1, 1]} : vector<48x32xf32> to vector<32x32xf32>
    %4 = vector.extract_strided_slice %2 {offsets = [32, 0], sizes = [8, 32], strides = [1, 1]} : vector<48x32xf32> to vector<8x32xf32>
    %5 = vector.extract_strided_slice %2 {offsets = [40, 0], sizes = [8, 32], strides = [1, 1]} : vector<48x32xf32> to vector<8x32xf32>
    %c0_3 = arith.constant 0 : index
    %c0_4 = arith.constant 0 : index
    %6 = vector.load %arg3[%c0_3, %c0_4] : memref<64x8xf32, #tpu.memory_space<vmem>>, vector<64x8xf32>
    %cst_5 = arith.constant dense<0.000000e+00> : vector<64x32xf32>
    %7 = tpu.matmul %6, %5, %cst_5 {dimension_numbers = #tpu.dot_dimension_numbers<[1], [0], [0], [1], [0, 0, 1, 1], [], []>} : vector<64x8xf32>, vector<8x32xf32>, vector<64x32xf32> -> vector<64x32xf32>
    %8 = vector.extract_strided_slice %4 {offsets = [0, 0], sizes = [8, 16], strides = [1, 1]} : vector<8x32xf32> to vector<8x16xf32>
    %cst_6 = arith.constant dense<0xFF800000> : vector<8xf32>
    %9 = vector.multi_reduction <maximumf>, %8, %cst_6 [1] : vector<8x16xf32> to vector<8xf32>
    %10 = vector.shape_cast %9 : vector<8xf32> to vector<8x1xf32>
    %11 = vector.broadcast %10 : vector<8x1xf32> to vector<8x16xf32>
    %12 = arith.subf %8, %11 : vector<8x16xf32>
    %13 = math.exp %12 : vector<8x16xf32>
    %cst_7 = arith.constant dense<0.000000e+00> : vector<8xf32>
    %14 = vector.multi_reduction <add>, %13, %cst_7 [1] : vector<8x16xf32> to vector<8xf32>
    %15 = vector.shape_cast %14 : vector<8xf32> to vector<8x1xf32>
    %16 = vector.broadcast %15 : vector<8x1xf32> to vector<8x16xf32>
    %17 = arith.divf %13, %16 : vector<8x16xf32>
    %18 = vector.extract_strided_slice %5 {offsets = [0, 0], sizes = [8, 16], strides = [1, 1]} : vector<8x32xf32> to vector<8x16xf32>
    %cst_8 = arith.constant dense<0.000000e+00> : vector<8x8xf32>
    %19 = tpu.matmul %18, %17, %cst_8 {dimension_numbers = #tpu.dot_dimension_numbers<[1], [1], [0], [0], [0, 0, 1, 0], [], []>} : vector<8x16xf32>, vector<8x16xf32>, vector<8x8xf32> -> vector<8x8xf32>
    %20 = vector.extract_strided_slice %3 {offsets = [0, 0], sizes = [32, 16], strides = [1, 1]} : vector<32x32xf32> to vector<32x16xf32>
    %21 = vector.extract_strided_slice %20 {offsets = [0, 0], sizes = [8, 16], strides = [1, 1]} : vector<32x16xf32> to vector<8x16xf32>
    %cst_9 = arith.constant dense<0.000000e+00> : vector<8x16xf32>
    %22 = tpu.matmul %19, %21, %cst_9 {dimension_numbers = #tpu.dot_dimension_numbers<[1], [0], [0], [1], [0, 0, 1, 1], [], []>} : vector<8x8xf32>, vector<8x16xf32>, vector<8x16xf32> -> vector<8x16xf32>
    %23 = vector.extract_strided_slice %20 {offsets = [8, 0], sizes = [8, 16], strides = [1, 1]} : vector<32x16xf32> to vector<8x16xf32>
    %cst_10 = arith.constant dense<0.000000e+00> : vector<8x16xf32>
    %24 = tpu.matmul %19, %23, %cst_10 {dimension_numbers = #tpu.dot_dimension_numbers<[1], [0], [0], [1], [0, 0, 1, 1], [], []>} : vector<8x8xf32>, vector<8x16xf32>, vector<8x16xf32> -> vector<8x16xf32>
    %25 = vector.extract_strided_slice %20 {offsets = [16, 0], sizes = [8, 16], strides = [1, 1]} : vector<32x16xf32> to vector<8x16xf32>
    %cst_11 = arith.constant dense<0.000000e+00> : vector<8x16xf32>
    %26 = tpu.matmul %19, %25, %cst_11 {dimension_numbers = #tpu.dot_dimension_numbers<[1], [0], [0], [1], [0, 0, 1, 1], [], []>} : vector<8x8xf32>, vector<8x16xf32>, vector<8x16xf32> -> vector<8x16xf32>
    %27 = vector.extract_strided_slice %20 {offsets = [24, 0], sizes = [8, 16], strides = [1, 1]} : vector<32x16xf32> to vector<8x16xf32>
    %cst_12 = arith.constant dense<0.000000e+00> : vector<8x16xf32>
    %28 = tpu.matmul %19, %27, %cst_12 {dimension_numbers = #tpu.dot_dimension_numbers<[1], [0], [0], [1], [0, 0, 1, 1], [], []>} : vector<8x8xf32>, vector<8x16xf32>, vector<8x16xf32> -> vector<8x16xf32>
    %29 = tpu.concatenate %22, %24, %26, %28 in 0 : vector<8x16xf32>, vector<8x16xf32>, vector<8x16xf32>, vector<8x16xf32> -> vector<32x16xf32>
    %30 = vector.extract_strided_slice %4 {offsets = [0, 16], sizes = [8, 16], strides = [1, 1]} : vector<8x32xf32> to vector<8x16xf32>
    %cst_13 = arith.constant dense<0xFF800000> : vector<8xf32>
    %31 = vector.multi_reduction <maximumf>, %30, %cst_13 [1] : vector<8x16xf32> to vector<8xf32>
    %32 = vector.shape_cast %31 : vector<8xf32> to vector<8x1xf32>
    %33 = vector.broadcast %32 : vector<8x1xf32> to vector<8x16xf32>
    %34 = arith.subf %30, %33 : vector<8x16xf32>
    %35 = math.exp %34 : vector<8x16xf32>
    %cst_14 = arith.constant dense<0.000000e+00> : vector<8xf32>
    %36 = vector.multi_reduction <add>, %35, %cst_14 [1] : vector<8x16xf32> to vector<8xf32>
    %37 = vector.shape_cast %36 : vector<8xf32> to vector<8x1xf32>
    %38 = vector.broadcast %37 : vector<8x1xf32> to vector<8x16xf32>
    %39 = arith.divf %35, %38 : vector<8x16xf32>
    %40 = vector.extract_strided_slice %5 {offsets = [0, 16], sizes = [8, 16], strides = [1, 1]} : vector<8x32xf32> to vector<8x16xf32>
    %cst_15 = arith.constant dense<0.000000e+00> : vector<8x8xf32>
    %41 = tpu.matmul %40, %39, %cst_15 {dimension_numbers = #tpu.dot_dimension_numbers<[1], [1], [0], [0], [0, 0, 1, 0], [], []>} : vector<8x16xf32>, vector<8x16xf32>, vector<8x8xf32> -> vector<8x8xf32>
    %42 = vector.extract_strided_slice %3 {offsets = [0, 16], sizes = [32, 16], strides = [1, 1]} : vector<32x32xf32> to vector<32x16xf32>
    %43 = vector.extract_strided_slice %42 {offsets = [0, 0], sizes = [8, 16], strides = [1, 1]} : vector<32x16xf32> to vector<8x16xf32>
    %cst_16 = arith.constant dense<0.000000e+00> : vector<8x16xf32>
    %44 = tpu.matmul %41, %43, %cst_16 {dimension_numbers = #tpu.dot_dimension_numbers<[1], [0], [0], [1], [0, 0, 1, 1], [], []>} : vector<8x8xf32>, vector<8x16xf32>, vector<8x16xf32> -> vector<8x16xf32>
    %45 = vector.extract_strided_slice %42 {offsets = [8, 0], sizes = [8, 16], strides = [1, 1]} : vector<32x16xf32> to vector<8x16xf32>
    %cst_17 = arith.constant dense<0.000000e+00> : vector<8x16xf32>
    %46 = tpu.matmul %41, %45, %cst_17 {dimension_numbers = #tpu.dot_dimension_numbers<[1], [0], [0], [1], [0, 0, 1, 1], [], []>} : vector<8x8xf32>, vector<8x16xf32>, vector<8x16xf32> -> vector<8x16xf32>
    %47 = vector.extract_strided_slice %42 {offsets = [16, 0], sizes = [8, 16], strides = [1, 1]} : vector<32x16xf32> to vector<8x16xf32>
    %cst_18 = arith.constant dense<0.000000e+00> : vector<8x16xf32>
    %48 = tpu.matmul %41, %47, %cst_18 {dimension_numbers = #tpu.dot_dimension_numbers<[1], [0], [0], [1], [0, 0, 1, 1], [], []>} : vector<8x8xf32>, vector<8x16xf32>, vector<8x16xf32> -> vector<8x16xf32>
    %49 = vector.extract_strided_slice %42 {offsets = [24, 0], sizes = [8, 16], strides = [1, 1]} : vector<32x16xf32> to vector<8x16xf32>
    %cst_19 = arith.constant dense<0.000000e+00> : vector<8x16xf32>
    %50 = tpu.matmul %41, %49, %cst_19 {dimension_numbers = #tpu.dot_dimension_numbers<[1], [0], [0], [1], [0, 0, 1, 1], [], []>} : vector<8x8xf32>, vector<8x16xf32>, vector<8x16xf32> -> vector<8x16xf32>
    %51 = tpu.concatenate %44, %46, %48, %50 in 0 : vector<8x16xf32>, vector<8x16xf32>, vector<8x16xf32>, vector<8x16xf32> -> vector<32x16xf32>
    %52 = tpu.concatenate %29, %51 in 1 : vector<32x16xf32>, vector<32x16xf32> -> vector<32x32xf32>
    %53 = vector.extract_strided_slice %7 {offsets = [0, 0], sizes = [8, 32], strides = [1, 1]} : vector<64x32xf32> to vector<8x32xf32>
    %54 = arith.addf %53, %5 : vector<8x32xf32>
    %cst_20 = arith.constant 0.000000e+00 : f32
    %55 = vector.broadcast %cst_20 : f32 to vector<8x32xf32>
    %56 = arith.maximumf %54, %55 : vector<8x32xf32>
    %57 = tpu.concatenate %56, %56, %56, %56 in 0 : vector<8x32xf32>, vector<8x32xf32>, vector<8x32xf32>, vector<8x32xf32> -> vector<32x32xf32>
    %58 = vector.extract_strided_slice %3 {offsets = [0, 0], sizes = [1, 32], strides = [1, 1]} : vector<32x32xf32> to vector<1x32xf32>
    %59 = vector.shape_cast %58 : vector<1x32xf32> to vector<1x32xf32>
    %60 = vector.broadcast %59 : vector<1x32xf32> to vector<8x32xf32>
    %61 = vector.extract_strided_slice %3 {offsets = [8, 0], sizes = [1, 32], strides = [1, 1]} : vector<32x32xf32> to vector<1x32xf32>
    %62 = vector.shape_cast %61 : vector<1x32xf32> to vector<1x32xf32>
    %63 = vector.broadcast %62 : vector<1x32xf32> to vector<8x32xf32>
    %64 = vector.extract_strided_slice %3 {offsets = [16, 0], sizes = [1, 32], strides = [1, 1]} : vector<32x32xf32> to vector<1x32xf32>
    %65 = vector.shape_cast %64 : vector<1x32xf32> to vector<1x32xf32>
    %66 = vector.broadcast %65 : vector<1x32xf32> to vector<8x32xf32>
    %67 = vector.extract_strided_slice %3 {offsets = [24, 0], sizes = [1, 32], strides = [1, 1]} : vector<32x32xf32> to vector<1x32xf32>
    %68 = vector.shape_cast %67 : vector<1x32xf32> to vector<1x32xf32>
    %69 = vector.broadcast %68 : vector<1x32xf32> to vector<8x32xf32>
    %70 = tpu.concatenate %60, %63, %66, %69 in 0 : vector<8x32xf32>, vector<8x32xf32>, vector<8x32xf32>, vector<8x32xf32> -> vector<32x32xf32>
    %71 = arith.mulf %70, %57 : vector<32x32xf32>
    %72 = arith.addf %52, %71 : vector<32x32xf32>
    %73 = vector.extract_strided_slice %7 {offsets = [8, 0], sizes = [8, 32], strides = [1, 1]} : vector<64x32xf32> to vector<8x32xf32>
    %74 = arith.addf %73, %5 : vector<8x32xf32>
    %cst_21 = arith.constant 0.000000e+00 : f32
    %75 = vector.broadcast %cst_21 : f32 to vector<8x32xf32>
    %76 = arith.maximumf %74, %75 : vector<8x32xf32>
    %77 = tpu.concatenate %76, %76, %76, %76 in 0 : vector<8x32xf32>, vector<8x32xf32>, vector<8x32xf32>, vector<8x32xf32> -> vector<32x32xf32>
    %78 = vector.extract_strided_slice %3 {offsets = [1, 0], sizes = [1, 32], strides = [1, 1]} : vector<32x32xf32> to vector<1x32xf32>
    %79 = vector.shape_cast %78 : vector<1x32xf32> to vector<1x32xf32>
    %80 = vector.broadcast %79 : vector<1x32xf32> to vector<8x32xf32>
    %81 = vector.extract_strided_slice %3 {offsets = [9, 0], sizes = [1, 32], strides = [1, 1]} : vector<32x32xf32> to vector<1x32xf32>
    %82 = vector.shape_cast %81 : vector<1x32xf32> to vector<1x32xf32>
    %83 = vector.broadcast %82 : vector<1x32xf32> to vector<8x32xf32>
    %84 = vector.extract_strided_slice %3 {offsets = [17, 0], sizes = [1, 32], strides = [1, 1]} : vector<32x32xf32> to vector<1x32xf32>
    %85 = vector.shape_cast %84 : vector<1x32xf32> to vector<1x32xf32>
    %86 = vector.broadcast %85 : vector<1x32xf32> to vector<8x32xf32>
    %87 = vector.extract_strided_slice %3 {offsets = [25, 0], sizes = [1, 32], strides = [1, 1]} : vector<32x32xf32> to vector<1x32xf32>
    %88 = vector.shape_cast %87 : vector<1x32xf32> to vector<1x32xf32>
    %89 = vector.broadcast %88 : vector<1x32xf32> to vector<8x32xf32>
    %90 = tpu.concatenate %80, %83, %86, %89 in 0 : vector<8x32xf32>, vector<8x32xf32>, vector<8x32xf32>, vector<8x32xf32> -> vector<32x32xf32>
    %91 = arith.mulf %90, %77 : vector<32x32xf32>
    %92 = arith.addf %72, %91 : vector<32x32xf32>
    %93 = vector.extract_strided_slice %7 {offsets = [16, 0], sizes = [8, 32], strides = [1, 1]} : vector<64x32xf32> to vector<8x32xf32>
    %94 = arith.addf %93, %5 : vector<8x32xf32>
    %cst_22 = arith.constant 0.000000e+00 : f32
    %95 = vector.broadcast %cst_22 : f32 to vector<8x32xf32>
    %96 = arith.maximumf %94, %95 : vector<8x32xf32>
    %97 = tpu.concatenate %96, %96, %96, %96 in 0 : vector<8x32xf32>, vector<8x32xf32>, vector<8x32xf32>, vector<8x32xf32> -> vector<32x32xf32>
    %98 = vector.extract_strided_slice %3 {offsets = [2, 0], sizes = [1, 32], strides = [1, 1]} : vector<32x32xf32> to vector<1x32xf32>
    %99 = vector.shape_cast %98 : vector<1x32xf32> to vector<1x32xf32>
    %100 = vector.broadcast %99 : vector<1x32xf32> to vector<8x32xf32>
    %101 = vector.extract_strided_slice %3 {offsets = [10, 0], sizes = [1, 32], strides = [1, 1]} : vector<32x32xf32> to vector<1x32xf32>
    %102 = vector.shape_cast %101 : vector<1x32xf32> to vector<1x32xf32>
    %103 = vector.broadcast %102 : vector<1x32xf32> to vector<8x32xf32>
    %104 = vector.extract_strided_slice %3 {offsets = [18, 0], sizes = [1, 32], strides = [1, 1]} : vector<32x32xf32> to vector<1x32xf32>
    %105 = vector.shape_cast %104 : vector<1x32xf32> to vector<1x32xf32>
    %106 = vector.broadcast %105 : vector<1x32xf32> to vector<8x32xf32>
    %107 = vector.extract_strided_slice %3 {offsets = [26, 0], sizes = [1, 32], strides = [1, 1]} : vector<32x32xf32> to vector<1x32xf32>
    %108 = vector.shape_cast %107 : vector<1x32xf32> to vector<1x32xf32>
    %109 = vector.broadcast %108 : vector<1x32xf32> to vector<8x32xf32>
    %110 = tpu.concatenate %100, %103, %106, %109 in 0 : vector<8x32xf32>, vector<8x32xf32>, vector<8x32xf32>, vector<8x32xf32> -> vector<32x32xf32>
    %111 = arith.mulf %110, %97 : vector<32x32xf32>
    %112 = arith.addf %92, %111 : vector<32x32xf32>
    %113 = vector.extract_strided_slice %7 {offsets = [24, 0], sizes = [8, 32], strides = [1, 1]} : vector<64x32xf32> to vector<8x32xf32>
    %114 = arith.addf %113, %5 : vector<8x32xf32>
    %cst_23 = arith.constant 0.000000e+00 : f32
    %115 = vector.broadcast %cst_23 : f32 to vector<8x32xf32>
    %116 = arith.maximumf %114, %115 : vector<8x32xf32>
    %117 = tpu.concatenate %116, %116, %116, %116 in 0 : vector<8x32xf32>, vector<8x32xf32>, vector<8x32xf32>, vector<8x32xf32> -> vector<32x32xf32>
    %118 = vector.extract_strided_slice %3 {offsets = [3, 0], sizes = [1, 32], strides = [1, 1]} : vector<32x32xf32> to vector<1x32xf32>
    %119 = vector.shape_cast %118 : vector<1x32xf32> to vector<1x32xf32>
    %120 = vector.broadcast %119 : vector<1x32xf32> to vector<8x32xf32>
    %121 = vector.extract_strided_slice %3 {offsets = [11, 0], sizes = [1, 32], strides = [1, 1]} : vector<32x32xf32> to vector<1x32xf32>
    %122 = vector.shape_cast %121 : vector<1x32xf32> to vector<1x32xf32>
    %123 = vector.broadcast %122 : vector<1x32xf32> to vector<8x32xf32>
    %124 = vector.extract_strided_slice %3 {offsets = [19, 0], sizes = [1, 32], strides = [1, 1]} : vector<32x32xf32> to vector<1x32xf32>
    %125 = vector.shape_cast %124 : vector<1x32xf32> to vector<1x32xf32>
    %126 = vector.broadcast %125 : vector<1x32xf32> to vector<8x32xf32>
    %127 = vector.extract_strided_slice %3 {offsets = [27, 0], sizes = [1, 32], strides = [1, 1]} : vector<32x32xf32> to vector<1x32xf32>
    %128 = vector.shape_cast %127 : vector<1x32xf32> to vector<1x32xf32>
    %129 = vector.broadcast %128 : vector<1x32xf32> to vector<8x32xf32>
    %130 = tpu.concatenate %120, %123, %126, %129 in 0 : vector<8x32xf32>, vector<8x32xf32>, vector<8x32xf32>, vector<8x32xf32> -> vector<32x32xf32>
    %131 = arith.mulf %130, %117 : vector<32x32xf32>
    %132 = arith.addf %112, %131 : vector<32x32xf32>
    %133 = vector.extract_strided_slice %7 {offsets = [32, 0], sizes = [8, 32], strides = [1, 1]} : vector<64x32xf32> to vector<8x32xf32>
    %134 = arith.addf %133, %5 : vector<8x32xf32>
    %cst_24 = arith.constant 0.000000e+00 : f32
    %135 = vector.broadcast %cst_24 : f32 to vector<8x32xf32>
    %136 = arith.maximumf %134, %135 : vector<8x32xf32>
    %137 = tpu.concatenate %136, %136, %136, %136 in 0 : vector<8x32xf32>, vector<8x32xf32>, vector<8x32xf32>, vector<8x32xf32> -> vector<32x32xf32>
    %138 = vector.extract_strided_slice %3 {offsets = [4, 0], sizes = [1, 32], strides = [1, 1]} : vector<32x32xf32> to vector<1x32xf32>
    %139 = vector.shape_cast %138 : vector<1x32xf32> to vector<1x32xf32>
    %140 = vector.broadcast %139 : vector<1x32xf32> to vector<8x32xf32>
    %141 = vector.extract_strided_slice %3 {offsets = [12, 0], sizes = [1, 32], strides = [1, 1]} : vector<32x32xf32> to vector<1x32xf32>
    %142 = vector.shape_cast %141 : vector<1x32xf32> to vector<1x32xf32>
    %143 = vector.broadcast %142 : vector<1x32xf32> to vector<8x32xf32>
    %144 = vector.extract_strided_slice %3 {offsets = [20, 0], sizes = [1, 32], strides = [1, 1]} : vector<32x32xf32> to vector<1x32xf32>
    %145 = vector.shape_cast %144 : vector<1x32xf32> to vector<1x32xf32>
    %146 = vector.broadcast %145 : vector<1x32xf32> to vector<8x32xf32>
    %147 = vector.extract_strided_slice %3 {offsets = [28, 0], sizes = [1, 32], strides = [1, 1]} : vector<32x32xf32> to vector<1x32xf32>
    %148 = vector.shape_cast %147 : vector<1x32xf32> to vector<1x32xf32>
    %149 = vector.broadcast %148 : vector<1x32xf32> to vector<8x32xf32>
    %150 = tpu.concatenate %140, %143, %146, %149 in 0 : vector<8x32xf32>, vector<8x32xf32>, vector<8x32xf32>, vector<8x32xf32> -> vector<32x32xf32>
    %151 = arith.mulf %150, %137 : vector<32x32xf32>
    %152 = arith.addf %132, %151 : vector<32x32xf32>
    %153 = vector.extract_strided_slice %7 {offsets = [40, 0], sizes = [8, 32], strides = [1, 1]} : vector<64x32xf32> to vector<8x32xf32>
    %154 = arith.addf %153, %5 : vector<8x32xf32>
    %cst_25 = arith.constant 0.000000e+00 : f32
    %155 = vector.broadcast %cst_25 : f32 to vector<8x32xf32>
    %156 = arith.maximumf %154, %155 : vector<8x32xf32>
    %157 = tpu.concatenate %156, %156, %156, %156 in 0 : vector<8x32xf32>, vector<8x32xf32>, vector<8x32xf32>, vector<8x32xf32> -> vector<32x32xf32>
    %158 = vector.extract_strided_slice %3 {offsets = [5, 0], sizes = [1, 32], strides = [1, 1]} : vector<32x32xf32> to vector<1x32xf32>
    %159 = vector.shape_cast %158 : vector<1x32xf32> to vector<1x32xf32>
    %160 = vector.broadcast %159 : vector<1x32xf32> to vector<8x32xf32>
    %161 = vector.extract_strided_slice %3 {offsets = [13, 0], sizes = [1, 32], strides = [1, 1]} : vector<32x32xf32> to vector<1x32xf32>
    %162 = vector.shape_cast %161 : vector<1x32xf32> to vector<1x32xf32>
    %163 = vector.broadcast %162 : vector<1x32xf32> to vector<8x32xf32>
    %164 = vector.extract_strided_slice %3 {offsets = [21, 0], sizes = [1, 32], strides = [1, 1]} : vector<32x32xf32> to vector<1x32xf32>
    %165 = vector.shape_cast %164 : vector<1x32xf32> to vector<1x32xf32>
    %166 = vector.broadcast %165 : vector<1x32xf32> to vector<8x32xf32>
    %167 = vector.extract_strided_slice %3 {offsets = [29, 0], sizes = [1, 32], strides = [1, 1]} : vector<32x32xf32> to vector<1x32xf32>
    %168 = vector.shape_cast %167 : vector<1x32xf32> to vector<1x32xf32>
    %169 = vector.broadcast %168 : vector<1x32xf32> to vector<8x32xf32>
    %170 = tpu.concatenate %160, %163, %166, %169 in 0 : vector<8x32xf32>, vector<8x32xf32>, vector<8x32xf32>, vector<8x32xf32> -> vector<32x32xf32>
    %171 = arith.mulf %170, %157 : vector<32x32xf32>
    %172 = arith.addf %152, %171 : vector<32x32xf32>
    %173 = vector.extract_strided_slice %7 {offsets = [48, 0], sizes = [8, 32], strides = [1, 1]} : vector<64x32xf32> to vector<8x32xf32>
    %174 = arith.addf %173, %5 : vector<8x32xf32>
    %cst_26 = arith.constant 0.000000e+00 : f32
    %175 = vector.broadcast %cst_26 : f32 to vector<8x32xf32>
    %176 = arith.maximumf %174, %175 : vector<8x32xf32>
    %177 = tpu.concatenate %176, %176, %176, %176 in 0 : vector<8x32xf32>, vector<8x32xf32>, vector<8x32xf32>, vector<8x32xf32> -> vector<32x32xf32>
    %178 = vector.extract_strided_slice %3 {offsets = [6, 0], sizes = [1, 32], strides = [1, 1]} : vector<32x32xf32> to vector<1x32xf32>
    %179 = vector.shape_cast %178 : vector<1x32xf32> to vector<1x32xf32>
    %180 = vector.broadcast %179 : vector<1x32xf32> to vector<8x32xf32>
    %181 = vector.extract_strided_slice %3 {offsets = [14, 0], sizes = [1, 32], strides = [1, 1]} : vector<32x32xf32> to vector<1x32xf32>
    %182 = vector.shape_cast %181 : vector<1x32xf32> to vector<1x32xf32>
    %183 = vector.broadcast %182 : vector<1x32xf32> to vector<8x32xf32>
    %184 = vector.extract_strided_slice %3 {offsets = [22, 0], sizes = [1, 32], strides = [1, 1]} : vector<32x32xf32> to vector<1x32xf32>
    %185 = vector.shape_cast %184 : vector<1x32xf32> to vector<1x32xf32>
    %186 = vector.broadcast %185 : vector<1x32xf32> to vector<8x32xf32>
    %187 = vector.extract_strided_slice %3 {offsets = [30, 0], sizes = [1, 32], strides = [1, 1]} : vector<32x32xf32> to vector<1x32xf32>
    %188 = vector.shape_cast %187 : vector<1x32xf32> to vector<1x32xf32>
    %189 = vector.broadcast %188 : vector<1x32xf32> to vector<8x32xf32>
    %190 = tpu.concatenate %180, %183, %186, %189 in 0 : vector<8x32xf32>, vector<8x32xf32>, vector<8x32xf32>, vector<8x32xf32> -> vector<32x32xf32>
    %191 = arith.mulf %190, %177 : vector<32x32xf32>
    %192 = arith.addf %172, %191 : vector<32x32xf32>
    %193 = vector.extract_strided_slice %7 {offsets = [56, 0], sizes = [8, 32], strides = [1, 1]} : vector<64x32xf32> to vector<8x32xf32>
    %194 = arith.addf %193, %5 : vector<8x32xf32>
    %cst_27 = arith.constant 0.000000e+00 : f32
    %195 = vector.broadcast %cst_27 : f32 to vector<8x32xf32>
    %196 = arith.maximumf %194, %195 : vector<8x32xf32>
    %197 = tpu.concatenate %196, %196, %196, %196 in 0 : vector<8x32xf32>, vector<8x32xf32>, vector<8x32xf32>, vector<8x32xf32> -> vector<32x32xf32>
    %198 = vector.extract_strided_slice %3 {offsets = [7, 0], sizes = [1, 32], strides = [1, 1]} : vector<32x32xf32> to vector<1x32xf32>
    %199 = vector.shape_cast %198 : vector<1x32xf32> to vector<1x32xf32>
    %200 = vector.broadcast %199 : vector<1x32xf32> to vector<8x32xf32>
    %201 = vector.extract_strided_slice %3 {offsets = [15, 0], sizes = [1, 32], strides = [1, 1]} : vector<32x32xf32> to vector<1x32xf32>
    %202 = vector.shape_cast %201 : vector<1x32xf32> to vector<1x32xf32>
    %203 = vector.broadcast %202 : vector<1x32xf32> to vector<8x32xf32>
    %204 = vector.extract_strided_slice %3 {offsets = [23, 0], sizes = [1, 32], strides = [1, 1]} : vector<32x32xf32> to vector<1x32xf32>
    %205 = vector.shape_cast %204 : vector<1x32xf32> to vector<1x32xf32>
    %206 = vector.broadcast %205 : vector<1x32xf32> to vector<8x32xf32>
    %207 = vector.extract_strided_slice %3 {offsets = [31, 0], sizes = [1, 32], strides = [1, 1]} : vector<32x32xf32> to vector<1x32xf32>
    %208 = vector.shape_cast %207 : vector<1x32xf32> to vector<1x32xf32>
    %209 = vector.broadcast %208 : vector<1x32xf32> to vector<8x32xf32>
    %210 = tpu.concatenate %200, %203, %206, %209 in 0 : vector<8x32xf32>, vector<8x32xf32>, vector<8x32xf32>, vector<8x32xf32> -> vector<32x32xf32>
    %211 = arith.mulf %210, %197 : vector<32x32xf32>
    %212 = arith.addf %192, %211 : vector<32x32xf32>
    %c0_28 = arith.constant 0 : index
    %c0_29 = arith.constant 0 : index
    %213 = vector.load %arg4[%c0_28, %c0_29] : memref<32x32xf32, #tpu.memory_space<vmem>>, vector<32x32xf32>
    %cst_30 = arith.constant dense<0.000000e+00> : vector<32x32xf32>
    %214 = tpu.matmul %213, %212, %cst_30 {dimension_numbers = #tpu.dot_dimension_numbers<[1], [0], [0], [1], [0, 0, 1, 1], [], []>} : vector<32x32xf32>, vector<32x32xf32>, vector<32x32xf32> -> vector<32x32xf32>
    %c0_31 = arith.constant 0 : index
    %c0_32 = arith.constant 0 : index
    %215 = vector.load %arg5[%c0_31, %c0_32] : memref<32x1xf32, #tpu.memory_space<vmem>>, vector<32x1xf32>
    %216 = vector.broadcast %215 : vector<32x1xf32> to vector<32x32xf32>
    %217 = arith.addf %214, %216 : vector<32x32xf32>
    %218 = vector.extract_strided_slice %0 {offsets = [0, 0], sizes = [32, 32], strides = [1, 1]} : vector<33x32xf32> to vector<32x32xf32>
    %219 = arith.addf %217, %218 : vector<32x32xf32>
    %cst_33 = arith.constant 0.000000e+00 : f32
    %220 = vector.broadcast %cst_33 : f32 to vector<32x32xf32>
    %221 = arith.maximumf %219, %220 : vector<32x32xf32>
    %c0_34 = arith.constant 0 : index
    %c0_35 = arith.constant 0 : index
    %222 = vector.load %arg6[%c0_34, %c0_35] : memref<32x32xf32, #tpu.memory_space<vmem>>, vector<32x32xf32>
    tpu.vector_store %arg6[%c0_34, %c0_35], %221 {strides = array<i32>} : memref<32x32xf32, #tpu.memory_space<vmem>>, vector<32x32xf32>,
    return
  }
  func.func @transform_0(%arg0: i32) -> (i32, i32) {
    %c0_i32 = arith.constant 0 : i32
    %c0_i32_0 = arith.constant 0 : i32
    return %c0_i32, %arg0 : i32, i32
  }
  func.func @transform_1(%arg0: i32) -> (i32, i32) {
    %c0_i32 = arith.constant 0 : i32
    %c0_i32_0 = arith.constant 0 : i32
    %c0_i32_1 = arith.constant 0 : i32
    return %c0_i32, %c0_i32_0 : i32, i32
  }
  func.func @transform_2(%arg0: i32) -> (i32, i32) {
    %c0_i32 = arith.constant 0 : i32
    %c0_i32_0 = arith.constant 0 : i32
    %c0_i32_1 = arith.constant 0 : i32
    return %c0_i32, %c0_i32_0 : i32, i32
  }
  func.func @transform_3(%arg0: i32) -> (i32, i32) {
    %c0_i32 = arith.constant 0 : i32
    %c0_i32_0 = arith.constant 0 : i32
    %c0_i32_1 = arith.constant 0 : i32
    return %c0_i32, %c0_i32_0 : i32, i32
  }
  func.func @transform_4(%arg0: i32) -> (i32, i32) {
    %c0_i32 = arith.constant 0 : i32
    %c0_i32_0 = arith.constant 0 : i32
    %c0_i32_1 = arith.constant 0 : i32
    return %c0_i32, %c0_i32_0 : i32, i32
  }
  func.func @transform_5(%arg0: i32) -> (i32, i32) {
    %c0_i32 = arith.constant 0 : i32
    %c0_i32_0 = arith.constant 0 : i32
    return %c0_i32, %arg0 : i32, i32
  }
}

</mosaic_0001>

<llo_original>
// kernel: mgr_forward_pallas.1
$region0: #{mgr_forward_pallas.1}
  #allocation0 [shape = 'u32[]', space=smem, size = 0x4, offset = 0x4, fixed_abs, tag = 'smem constant byte address 0x4 - core index']
  #allocation1 [shape = 'u32[72,128]{1,0:T(1,128)}', space=vmem, size = 0x9000, scoped, tag = 'internal scratch']
  %s0 = inlined_call_operand.vmem [shape: f32[33,32], index: 0, kind: input, shape index: {}]
  %s1 = inlined_call_operand.vmem [shape: f32[48,33], index: 1, kind: input, shape index: {}]
  %s2 = inlined_call_operand.vmem [shape: f32[64,8], index: 2, kind: input, shape index: {}]
  %s3 = inlined_call_operand.vmem [shape: f32[32,32], index: 3, kind: input, shape index: {}]
  %s4 = inlined_call_operand.vmem [shape: f32[32,1], index: 4, kind: input, shape index: {}]
  %s5 = inlined_call_operand.vmem [shape: f32[32,32], index: 5, kind: output, shape index: {}]
  %s6 = sld [smem:[#allocation0]]
  $region30: #{mgr_forward_pallas.1} parent=0
    _
  %s8 = ssub.s32 1, %s6
  %s9 = scalar_select 0, %s8, %s6
  // Predicated region
  $region2: #{mgr_forward_pallas.1} parent=0 // pred_check
    _
  $region3: #{mgr_forward_pallas.1} parent=0 // pred_check_branch
    %11 = sbr.rel (0) target = $region5
  $region4: #{mgr_forward_pallas.1} parent=0 // pred_region
    _
  $region5: #{mgr_forward_pallas.1} parent=0 // pred_fallthru
    _
  // Predicated region
  $region6: #{mgr_forward_pallas.1} parent=0 // pred_check
    _
  $region7: #{mgr_forward_pallas.1} parent=0 // pred_check_branch
    %13 = sbr.rel (0) target = $region9
  $region8: #{mgr_forward_pallas.1} parent=0 // pred_region
    _
  $region9: #{mgr_forward_pallas.1} parent=0 // pred_fallthru
    _
  // Predicated region
  $region10: #{mgr_forward_pallas.1} parent=0 // pred_check
    _
  $region11: #{mgr_forward_pallas.1} parent=0 // pred_check_branch
    %15 = sbr.rel (0) target = $region13
  $region12: #{mgr_forward_pallas.1} parent=0 // pred_region
    _
  $region13: #{mgr_forward_pallas.1} parent=0 // pred_fallthru
    _
  // Predicated region
  $region14: #{mgr_forward_pallas.1} parent=0 // pred_check
    _
  $region15: #{mgr_forward_pallas.1} parent=0 // pred_check_branch
    %17 = sbr.rel (0) target = $region17
  $region16: #{mgr_forward_pallas.1} parent=0 // pred_region
    _
  $region17: #{mgr_forward_pallas.1} parent=0 // pred_fallthru
    _
  // Predicated region
  $region18: #{mgr_forward_pallas.1} parent=0 // pred_check
    _
  $region19: #{mgr_forward_pallas.1} parent=0 // pred_check_branch
    %19 = sbr.rel (0) target = $region21
  $region20: #{mgr_forward_pallas.1} parent=0 // pred_region
    _
  $region21: #{mgr_forward_pallas.1} parent=0 // pred_fallthru
    _
  %v20 = vld [vmem:[%s0] sm:$0xff]
  %v21 = vld [vmem:[%s0 + $0x8] sm:$0xff]
  %v22 = vld [vmem:[%s0 + $0x10] sm:$0xff]
  %v23 = vld [vmem:[%s0 + $0x18] sm:$0xff]
  %v24 = vld [vmem:[%s0 + $0x20] sm:$0x1]
  %v25 = vld [vmem:[%s1] sm:$0xff]
  %v26 = vld [vmem:[%s1 + $0x8] sm:$0xff]
  %v27 = vld [vmem:[%s1 + $0x10] sm:$0xff]
  %v28 = vld [vmem:[%s1 + $0x18] sm:$0xff]
  %v29 = vld [vmem:[%s1 + $0x20] sm:$0xff]
  %v30 = vld [vmem:[%s1 + $0x28] sm:$0xff]
  %vm31 = vcmask 269312
  %v33 = vsel %vm31, %v25, 0
  %v36 = vsel %vm31, %v26, 0
  %v39 = vsel %vm31, %v27, 0
  %v42 = vsel %vm31, %v28, 0
  %v45 = vsel %vm31, %v29, 0
  %v48 = vsel %vm31, %v30, 0
  %vm50 = vcmask 1040384
  %v52 = vsel %vm50, %v24, 0
  %54 = vmatpush.msra.mxu0 0.0
  %55 = vmatpush.msra.mxu0 0.0
  %56 = vmatpush.msra.mxu0 0.0
  %57 = vmatpush.msra.mxu0 0.0
  %58 = vmatpush.msra.mxu0 0.0
  %59 = vmatpush.msra.mxu0 0.0
  %60 = vmatpush.msra.mxu0 0.0
  %61 = vmatpush.msra.mxu0 0.0
  %62 = vmatpush.msra.mxu0 0.0
  %63 = vmatpush.msra.mxu0 0.0
  %64 = vmatpush.msra.mxu0 0.0
  %65 = vmatpush.msra.mxu0 %v52
  %66 = vmatpush.msra.mxu0 %v23
  %67 = vmatpush.msra.mxu0 %v22
  %68 = vmatpush.msra.mxu0 %v21
  %69 = vmatpush.msra.mxu0 %v20
  %70 = vmatmul.f32.gmra.mxu0 %v33
  %v71 = vpop.f32.mrf.mxu0
  %v72 = vadd.f32 0.0, %v71
  %73 = vmatmul.f32.gmra.mxu0 %v36
  %v74 = vpop.f32.mrf.mxu0
  %v75 = vadd.f32 0.0, %v74
  %76 = vmatmul.f32.gmra.mxu0 %v39
  %v77 = vpop.f32.mrf.mxu0
  %v78 = vadd.f32 0.0, %v77
  %79 = vmatmul.f32.gmra.mxu0 %v42
  %v80 = vpop.f32.mrf.mxu0
  %v81 = vadd.f32 0.0, %v80
  %82 = vmatmul.f32.gmra.mxu0 %v45
  %v83 = vpop.f32.mrf.mxu0
  %v84 = vadd.f32 0.0, %v83
  %85 = vmatmul.f32.gmra.mxu0 %v48
  %v86 = vpop.f32.mrf.mxu0
  %v87 = vadd.f32 0.0, %v86
  %88 = vdwg.mxu0
  %v89 = vld [vmem:[%s2] sm:$0xff]
  %v90 = vld [vmem:[%s2 + $0x8] sm:$0xff]
  %v91 = vld [vmem:[%s2 + $0x10] sm:$0xff]
  %v92 = vld [vmem:[%s2 + $0x18] sm:$0xff]
  %v93 = vld [vmem:[%s2 + $0x20] sm:$0xff]
  %v94 = vld [vmem:[%s2 + $0x28] sm:$0xff]
  %v95 = vld [vmem:[%s2 + $0x30] sm:$0xff]
  %v96 = vld [vmem:[%s2 + $0x38] sm:$0xff]
  %vm97 = vcmask 64512
  %v99 = vsel %vm97, %v89, 0
  %v102 = vsel %vm97, %v90, 0
  %v105 = vsel %vm97, %v91, 0
  %v108 = vsel %vm97, %v92, 0
  %v111 = vsel %vm97, %v93, 0
  %v114 = vsel %vm97, %v94, 0
  %v117 = vsel %vm97, %v95, 0
  %v120 = vsel %vm97, %v96, 0
  %122 = vmatpush.msra.mxu0 0.0
  %123 = vmatpush.msra.mxu0 0.0
  %124 = vmatpush.msra.mxu0 0.0
  %125 = vmatpush.msra.mxu0 0.0
  %126 = vmatpush.msra.mxu0 0.0
  %127 = vmatpush.msra.mxu0 0.0
  %128 = vmatpush.msra.mxu0 0.0
  %129 = vmatpush.msra.mxu0 0.0
  %130 = vmatpush.msra.mxu0 0.0
  %131 = vmatpush.msra.mxu0 0.0
  %132 = vmatpush.msra.mxu0 0.0
  %133 = vmatpush.msra.mxu0 0.0
  %134 = vmatpush.msra.mxu0 0.0
  %135 = vmatpush.msra.mxu0 0.0
  %136 = vmatpush.msra.mxu0 0.0
  %137 = vmatpush.msra.mxu0 %v87
  %138 = vmatmul.f32.gmra.mxu0 %v99
  %v139 = vpop.f32.mrf.mxu0
  %v140 = vadd.f32 0.0, %v139
  %141 = vmatmul.f32.gmra.mxu0 %v102
  %v142 = vpop.f32.mrf.mxu0
  %v143 = vadd.f32 0.0, %v142
  %144 = vmatmul.f32.gmra.mxu0 %v105
  %v145 = vpop.f32.mrf.mxu0
  %v146 = vadd.f32 0.0, %v145
  %147 = vmatmul.f32.gmra.mxu0 %v108
  %v148 = vpop.f32.mrf.mxu0
  %v149 = vadd.f32 0.0, %v148
  %150 = vmatmul.f32.gmra.mxu0 %v111
  %v151 = vpop.f32.mrf.mxu0
  %v152 = vadd.f32 0.0, %v151
  %153 = vmatmul.f32.gmra.mxu0 %v114
  %v154 = vpop.f32.mrf.mxu0
  %v155 = vadd.f32 0.0, %v154
  %156 = vmatmul.f32.gmra.mxu0 %v117
  %v157 = vpop.f32.mrf.mxu0
  %v158 = vadd.f32 0.0, %v157
  %159 = vmatmul.f32.gmra.mxu0 %v120
  %v160 = vpop.f32.mrf.mxu0
  %v161 = vadd.f32 0.0, %v160
  %162 = vdwg.mxu0
  %vm163 = vcmask 130048
  %v164 = vsel %vm163, %v84, -inf
  %165 = vmax.xlane.f32.xlu0 %v164
  %v166 = vpop.xlane.xlu0 %165
  %v167 = vsub.f32 %v84, %v166
  %v168 = vmul.f32 %v167, 1.442695
  %v169 = vpow.pop %v168
  %v170 = vsel %vm163, %v169, 0.0
  %171 = vadd.xlane.f32.xlu0 %v170
  %v172 = vpop.xlane.xlu0 %171
  %v173 = vrcp.pop %v172
  %v174 = vmul.f32 %v172, %v173
  %v175 = vsub.f32 1.0, %v174
  %v176 = vmul.f32 %v173, %v175
  %v177 = vadd.f32 %v173, %v176
  %vm178 = vweird.f32 %v172
  %vm179 = vweird.f32 %v173
  %vm180 = vmor %vm178, %vm179
  %v181 = vsel %vm180, %v173, %v177
  %v182 = vand.u32 2147483647, %v172
  %vm183 = vcmp.eq.f32.partialorder %v182, 8.507059e+37
  %v184 = vand.u32 %v172, 2147483648
  %v185 = vor.u32 1.1754944e-38, %v184
  %v186 = vsel %vm183, %v185, %v181
  %v187 = vmul.f32 %v169, %v186
  %v189 = vsel %vm163, %v87, 0
  %v192 = vsel %vm163, %v187, 0
  %194 = vmatpush.xpose.msra.mxu0 0.0
  %195 = vmatpush.xpose.msra.mxu0 0.0
  %196 = vmatpush.xpose.msra.mxu0 0.0
  %197 = vmatpush.xpose.msra.mxu0 0.0
  %198 = vmatpush.xpose.msra.mxu0 0.0
  %199 = vmatpush.xpose.msra.mxu0 0.0
  %200 = vmatpush.xpose.msra.mxu0 0.0
  %201 = vmatpush.xpose.msra.mxu0 0.0
  %202 = vmatpush.xpose.msra.mxu0 0.0
  %203 = vmatpush.xpose.msra.mxu0 0.0
  %204 = vmatpush.xpose.msra.mxu0 0.0
  %205 = vmatpush.xpose.msra.mxu0 0.0
  %206 = vmatpush.xpose.msra.mxu0 0.0
  %207 = vmatpush.xpose.msra.mxu0 0.0
  %208 = vmatpush.xpose.msra.mxu0 0.0
  %209 = vmatpush.xpose.msra.mxu0 %v192
  %210 = vmatmul.f32.gmra.mxu0 %v189
  %v211 = vpop.f32.mrf.mxu0
  %v212 = vadd.f32 0.0, %v211
  %213 = vdwg.mxu0
  %v215 = vsel %vm97, %v212, 0
  %217 = vmatpush.msra.mxu0 0.0
  %218 = vmatpush.msra.mxu0 0.0
  %219 = vmatpush.msra.mxu0 0.0
  %220 = vmatpush.msra.mxu0 0.0
  %221 = vmatpush.msra.mxu0 0.0
  %222 = vmatpush.msra.mxu0 0.0
  %223 = vmatpush.msra.mxu0 0.0
  %224 = vmatpush.msra.mxu0 0.0
  %225 = vmatpush.msra.mxu0 0.0
  %226 = vmatpush.msra.mxu0 0.0
  %227 = vmatpush.msra.mxu0 0.0
  %228 = vmatpush.msra.mxu0 0.0
  %229 = vmatpush.msra.mxu0 0.0
  %230 = vmatpush.msra.mxu0 0.0
  %231 = vmatpush.msra.mxu0 0.0
  %232 = vmatpush.msra.mxu0 %v72
  %233 = vmatmul.f32.gmra.mxu0 %v215
  %v234 = vpop.f32.mrf.mxu0
  %v235 = vadd.f32 0.0, %v234
  %236 = vdwg.mxu0
  %237 = vmatpush.msra.mxu0 0.0
  %238 = vmatpush.msra.mxu0 0.0
  %239 = vmatpush.msra.mxu0 0.0
  %240 = vmatpush.msra.mxu0 0.0
  %241 = vmatpush.msra.mxu0 0.0
  %242 = vmatpush.msra.mxu0 0.0
  %243 = vmatpush.msra.mxu0 0.0
  %244 = vmatpush.msra.mxu0 0.0
  %245 = vmatpush.msra.mxu0 0.0
  %246 = vmatpush.msra.mxu0 0.0
  %247 = vmatpush.msra.mxu0 0.0
  %248 = vmatpush.msra.mxu0 0.0
  %249 = vmatpush.msra.mxu0 0.0
  %250 = vmatpush.msra.mxu0 0.0
  %251 = vmatpush.msra.mxu0 0.0
  %252 = vmatpush.msra.mxu0 %v75
  %253 = vmatmul.f32.gmra.mxu0 %v215
  %v254 = vpop.f32.mrf.mxu0
  %v255 = vadd.f32 0.0, %v254
  %256 = vdwg.mxu0
  %257 = vmatpush.msra.mxu0 0.0
  %258 = vmatpush.msra.mxu0 0.0
  %259 = vmatpush.msra.mxu0 0.0
  %260 = vmatpush.msra.mxu0 0.0
  %261 = vmatpush.msra.mxu0 0.0
  %262 = vmatpush.msra.mxu0 0.0
  %263 = vmatpush.msra.mxu0 0.0
  %264 = vmatpush.msra.mxu0 0.0
  %265 = vmatpush.msra.mxu0 0.0
  %266 = vmatpush.msra.mxu0 0.0
  %267 = vmatpush.msra.mxu0 0.0
  %268 = vmatpush.msra.mxu0 0.0
  %269 = vmatpush.msra.mxu0 0.0
  %270 = vmatpush.msra.mxu0 0.0
  %271 = vmatpush.msra.mxu0 0.0
  %272 = vmatpush.msra.mxu0 %v78
  %273 = vmatmul.f32.gmra.mxu0 %v215
  %v274 = vpop.f32.mrf.mxu0
  %v275 = vadd.f32 0.0, %v274
  %276 = vdwg.mxu0
  %277 = vmatpush.msra.mxu0 0.0
  %278 = vmatpush.msra.mxu0 0.0
  %279 = vmatpush.msra.mxu0 0.0
  %280 = vmatpush.msra.mxu0 0.0
  %281 = vmatpush.msra.mxu0 0.0
  %282 = vmatpush.msra.mxu0 0.0
  %283 = vmatpush.msra.mxu0 0.0
  %284 = vmatpush.msra.mxu0 0.0
  %285 = vmatpush.msra.mxu0 0.0
  %286 = vmatpush.msra.mxu0 0.0
  %287 = vmatpush.msra.mxu0 0.0
  %288 = vmatpush.msra.mxu0 0.0
  %289 = vmatpush.msra.mxu0 0.0
  %290 = vmatpush.msra.mxu0 0.0
  %291 = vmatpush.msra.mxu0 0.0
  %292 = vmatpush.msra.mxu0 %v81
  %293 = vmatmul.f32.gmra.mxu0 %v215
  %v294 = vpop.f32.mrf.mxu0
  %v295 = vadd.f32 0.0, %v294
  %296 = vdwg.mxu0
  %vm297 = vcmask 261248
  %v298 = vsel %vm297, %v84, -inf
  %299 = vmax.xlane.f32.xlu0 %v298
  %v300 = vpop.xlane.xlu0 %299
  %v301 = vsub.f32 %v84, %v300
  %v302 = vmul.f32 %v301, 1.442695
  %v303 = vpow.pop %v302
  %305 = vrot.lane.b32.xlu0 %v303, 112
  %v306 = vpop.permute.xlu0 %305
  %v308 = vsel %vm163, %v306, 0.0
  %309 = vadd.xlane.f32.xlu0 %v308
  %v310 = vpop.xlane.xlu0 %309
  %v311 = vrcp.pop %v310
  %v312 = vmul.f32 %v310, %v311
  %v313 = vsub.f32 1.0, %v312
  %v314 = vmul.f32 %v311, %v313
  %v315 = vadd.f32 %v311, %v314
  %vm316 = vweird.f32 %v310
  %vm317 = vweird.f32 %v311
  %vm318 = vmor %vm316, %vm317
  %v319 = vsel %vm318, %v311, %v315
  %v320 = vand.u32 2147483647, %v310
  %vm321 = vcmp.eq.f32.partialorder %v320, 8.507059e+37
  %v322 = vand.u32 %v310, 2147483648
  %v323 = vor.u32 1.1754944e-38, %v322
  %v324 = vsel %vm321, %v323, %v319
  %v325 = vmul.f32 %v303, %v324
  %326 = vrot.lane.b32.xlu0 %v87, 112
  %v327 = vpop.permute.xlu0 %326
  %329 = vrot.lane.b32.xlu0 %v325, 112
  %v330 = vpop.permute.xlu0 %329
  %v331 = vsel %vm163, %v327, 0
  %v333 = vsel %vm163, %v330, 0
  %335 = vmatpush.xpose.msra.mxu0 0.0
  %336 = vmatpush.xpose.msra.mxu0 0.0
  %337 = vmatpush.xpose.msra.mxu0 0.0
  %338 = vmatpush.xpose.msra.mxu0 0.0
  %339 = vmatpush.xpose.msra.mxu0 0.0
  %340 = vmatpush.xpose.msra.mxu0 0.0
  %341 = vmatpush.xpose.msra.mxu0 0.0
  %342 = vmatpush.xpose.msra.mxu0 0.0
  %343 = vmatpush.xpose.msra.mxu0 0.0
  %344 = vmatpush.xpose.msra.mxu0 0.0
  %345 = vmatpush.xpose.msra.mxu0 0.0
  %346 = vmatpush.xpose.msra.mxu0 0.0
  %347 = vmatpush.xpose.msra.mxu0 0.0
  %348 = vmatpush.xpose.msra.mxu0 0.0
  %349 = vmatpush.xpose.msra.mxu0 0.0
  %350 = vmatpush.xpose.msra.mxu0 %v333
  %351 = vmatmul.f32.gmra.mxu0 %v331
  %v352 = vpop.f32.mrf.mxu0
  %v353 = vadd.f32 0.0, %v352
  %354 = vdwg.mxu0
  %356 = vrot.lane.b32.xlu0 %v72, 112
  %v357 = vpop.permute.xlu0 %356
  %v360 = vsel %vm97, %v353, 0
  %362 = vmatpush.msra.mxu0 0.0
  %363 = vmatpush.msra.mxu0 0.0
  %364 = vmatpush.msra.mxu0 0.0
  %365 = vmatpush.msra.mxu0 0.0
  %366 = vmatpush.msra.mxu0 0.0
  %367 = vmatpush.msra.mxu0 0.0
  %368 = vmatpush.msra.mxu0 0.0
  %369 = vmatpush.msra.mxu0 0.0
  %370 = vmatpush.msra.mxu0 0.0
  %371 = vmatpush.msra.mxu0 0.0
  %372 = vmatpush.msra.mxu0 0.0
  %373 = vmatpush.msra.mxu0 0.0
  %374 = vmatpush.msra.mxu0 0.0
  %375 = vmatpush.msra.mxu0 0.0
  %376 = vmatpush.msra.mxu0 0.0
  %377 = vmatpush.msra.mxu0 %v357
  %378 = vmatmul.f32.gmra.mxu0 %v360
  %v379 = vpop.f32.mrf.mxu0
  %v380 = vadd.f32 0.0, %v379
  %381 = vdwg.mxu0
  %383 = vrot.lane.b32.xlu0 %v75, 112
  %v384 = vpop.permute.xlu0 %383
  %386 = vmatpush.msra.mxu0 0.0
  %387 = vmatpush.msra.mxu0 0.0
  %388 = vmatpush.msra.mxu0 0.0
  %389 = vmatpush.msra.mxu0 0.0
  %390 = vmatpush.msra.mxu0 0.0
  %391 = vmatpush.msra.mxu0 0.0
  %392 = vmatpush.msra.mxu0 0.0
  %393 = vmatpush.msra.mxu0 0.0
  %394 = vmatpush.msra.mxu0 0.0
  %395 = vmatpush.msra.mxu0 0.0
  %396 = vmatpush.msra.mxu0 0.0
  %397 = vmatpush.msra.mxu0 0.0
  %398 = vmatpush.msra.mxu0 0.0
  %399 = vmatpush.msra.mxu0 0.0
  %400 = vmatpush.msra.mxu0 0.0
  %401 = vmatpush.msra.mxu0 %v384
  %402 = vmatmul.f32.gmra.mxu0 %v360
  %v403 = vpop.f32.mrf.mxu0
  %v404 = vadd.f32 0.0, %v403
  %405 = vdwg.mxu0
  %407 = vrot.lane.b32.xlu0 %v78, 112
  %v408 = vpop.permute.xlu0 %407
  %410 = vmatpush.msra.mxu0 0.0
  %411 = vmatpush.msra.mxu0 0.0
  %412 = vmatpush.msra.mxu0 0.0
  %413 = vmatpush.msra.mxu0 0.0
  %414 = vmatpush.msra.mxu0 0.0
  %415 = vmatpush.msra.mxu0 0.0
  %416 = vmatpush.msra.mxu0 0.0
  %417 = vmatpush.msra.mxu0 0.0
  %418 = vmatpush.msra.mxu0 0.0
  %419 = vmatpush.msra.mxu0 0.0
  %420 = vmatpush.msra.mxu0 0.0
  %421 = vmatpush.msra.mxu0 0.0
  %422 = vmatpush.msra.mxu0 0.0
  %423 = vmatpush.msra.mxu0 0.0
  %424 = vmatpush.msra.mxu0 0.0
  %425 = vmatpush.msra.mxu0 %v408
  %426 = vmatmul.f32.gmra.mxu0 %v360
  %v427 = vpop.f32.mrf.mxu0
  %v428 = vadd.f32 0.0, %v427
  %429 = vdwg.mxu0
  %431 = vrot.lane.b32.xlu0 %v81, 112
  %v432 = vpop.permute.xlu0 %431
  %434 = vmatpush.msra.mxu0 0.0
  %435 = vmatpush.msra.mxu0 0.0
  %436 = vmatpush.msra.mxu0 0.0
  %437 = vmatpush.msra.mxu0 0.0
  %438 = vmatpush.msra.mxu0 0.0
  %439 = vmatpush.msra.mxu0 0.0
  %440 = vmatpush.msra.mxu0 0.0
  %441 = vmatpush.msra.mxu0 0.0
  %442 = vmatpush.msra.mxu0 0.0
  %443 = vmatpush.msra.mxu0 0.0
  %444 = vmatpush.msra.mxu0 0.0
  %445 = vmatpush.msra.mxu0 0.0
  %446 = vmatpush.msra.mxu0 0.0
  %447 = vmatpush.msra.mxu0 0.0
  %448 = vmatpush.msra.mxu0 0.0
  %449 = vmatpush.msra.mxu0 %v432
  %450 = vmatmul.f32.gmra.mxu0 %v360
  %v451 = vpop.f32.mrf.mxu0
  %v452 = vadd.f32 0.0, %v451
  %453 = vdwg.mxu0
  %458 = vrot.lane.b32.xlu0 %v380, 16
  %v459 = vpop.permute.xlu0 %458
  %460 = vrot.lane.b32.xlu0 %v404, 16
  %v461 = vpop.permute.xlu0 %460
  %462 = vrot.lane.b32.xlu0 %v428, 16
  %v463 = vpop.permute.xlu0 %462
  %464 = vrot.lane.b32.xlu0 %v452, 16
  %v465 = vpop.permute.xlu0 %464
  %v470 = vsel %vm163, %v235, %v459
  %v471 = vsel %vm163, %v255, %v461
  %v472 = vsel %vm163, %v275, %v463
  %v473 = vsel %vm163, %v295, %v465
  %v474 = vadd.f32 %v140, %v87
  %v475 = vmax.f32 %v474, 0.0
  %v476 = vperm.slane %v72, 0
  %v477 = vperm.slane %v75, 0
  %v478 = vperm.slane %v78, 0
  %v479 = vperm.slane %v81, 0
  %v480 = vmul.f32 %v476, %v475
  %v481 = vmul.f32 %v477, %v475
  %v482 = vmul.f32 %v478, %v475
  %v483 = vmul.f32 %v479, %v475
  %v484 = vadd.f32 %v470, %v480
  %v485 = vadd.f32 %v471, %v481
  %v486 = vadd.f32 %v472, %v482
  %v487 = vadd.f32 %v473, %v483
  %v488 = vadd.f32 %v143, %v87
  %v489 = vmax.f32 %v488, 0.0
  %v490 = vperm.slane %v72, 1
  %v491 = vperm.slane %v75, 1
  %v492 = vperm.slane %v78, 1
  %v493 = vperm.slane %v81, 1
  %v494 = vmul.f32 %v490, %v489
  %v495 = vmul.f32 %v491, %v489
  %v496 = vmul.f32 %v492, %v489
  %v497 = vmul.f32 %v493, %v489
  %v498 = vadd.f32 %v484, %v494
  %v499 = vadd.f32 %v485, %v495
  %v500 = vadd.f32 %v486, %v496
  %v501 = vadd.f32 %v487, %v497
  %v502 = vadd.f32 %v146, %v87
  %v503 = vmax.f32 %v502, 0.0
  %v504 = vperm.slane %v72, 2
  %v505 = vperm.slane %v75, 2
  %v506 = vperm.slane %v78, 2
  %v507 = vperm.slane %v81, 2
  %v508 = vmul.f32 %v504, %v503
  %v509 = vmul.f32 %v505, %v503
  %v510 = vmul.f32 %v506, %v503
  %v511 = vmul.f32 %v507, %v503
  %v512 = vadd.f32 %v498, %v508
  %v513 = vadd.f32 %v499, %v509
  %v514 = vadd.f32 %v500, %v510
  %v515 = vadd.f32 %v501, %v511
  %v516 = vadd.f32 %v149, %v87
  %v517 = vmax.f32 %v516, 0.0
  %v518 = vperm.slane %v72, 3
  %v519 = vperm.slane %v75, 3
  %v520 = vperm.slane %v78, 3
  %v521 = vperm.slane %v81, 3
  %v522 = vmul.f32 %v518, %v517
  %v523 = vmul.f32 %v519, %v517
  %v524 = vmul.f32 %v520, %v517
  %v525 = vmul.f32 %v521, %v517
  %v526 = vadd.f32 %v512, %v522
  %v527 = vadd.f32 %v513, %v523
  %v528 = vadd.f32 %v514, %v524
  %v529 = vadd.f32 %v515, %v525
  %v530 = vadd.f32 %v152, %v87
  %v531 = vmax.f32 %v530, 0.0
  %v532 = vperm.slane %v72, 4
  %v533 = vperm.slane %v75, 4
  %v534 = vperm.slane %v78, 4
  %v535 = vperm.slane %v81, 4
  %v536 = vmul.f32 %v532, %v531
  %v537 = vmul.f32 %v533, %v531
  %v538 = vmul.f32 %v534, %v531
  %v539 = vmul.f32 %v535, %v531
  %v540 = vadd.f32 %v526, %v536
  %v541 = vadd.f32 %v527, %v537
  %v542 = vadd.f32 %v528, %v538
  %v543 = vadd.f32 %v529, %v539
  %v544 = vadd.f32 %v155, %v87
  %v545 = vmax.f32 %v544, 0.0
  %v546 = vperm.slane %v72, 5
  %v547 = vperm.slane %v75, 5
  %v548 = vperm.slane %v78, 5
  %v549 = vperm.slane %v81, 5
  %v550 = vmul.f32 %v546, %v545
  %v551 = vmul.f32 %v547, %v545
  %v552 = vmul.f32 %v548, %v545
  %v553 = vmul.f32 %v549, %v545
  %v554 = vadd.f32 %v540, %v550
  %v555 = vadd.f32 %v541, %v551
  %v556 = vadd.f32 %v542, %v552
  %v557 = vadd.f32 %v543, %v553
  %v558 = vadd.f32 %v158, %v87
  %v559 = vmax.f32 %v558, 0.0
  %v560 = vperm.slane %v72, 6
  %v561 = vperm.slane %v75, 6
  %v562 = vperm.slane %v78, 6
  %v563 = vperm.slane %v81, 6
  %v564 = vmul.f32 %v560, %v559
  %v565 = vmul.f32 %v561, %v559
  %v566 = vmul.f32 %v562, %v559
  %v567 = vmul.f32 %v563, %v559
  %v568 = vadd.f32 %v554, %v564
  %v569 = vadd.f32 %v555, %v565
  %v570 = vadd.f32 %v556, %v566
  %v571 = vadd.f32 %v557, %v567
  %v572 = vadd.f32 %v161, %v87
  %v573 = vmax.f32 %v572, 0.0
  %v574 = vperm.slane %v72, 7
  %v575 = vperm.slane %v75, 7
  %v576 = vperm.slane %v78, 7
  %v577 = vperm.slane %v81, 7
  %v578 = vmul.f32 %v574, %v573
  %v579 = vmul.f32 %v575, %v573
  %v580 = vmul.f32 %v576, %v573
  %v581 = vmul.f32 %v577, %v573
  %v582 = vadd.f32 %v568, %v578
  %v583 = vadd.f32 %v569, %v579
  %v584 = vadd.f32 %v570, %v580
  %v585 = vadd.f32 %v571, %v581
  %v586 = vld [vmem:[%s3] sm:$0xff]
  %v587 = vld [vmem:[%s3 + $0x8] sm:$0xff]
  %v588 = vld [vmem:[%s3 + $0x10] sm:$0xff]
  %v589 = vld [vmem:[%s3 + $0x18] sm:$0xff]
  %v590 = vld [vmem:[%s4] sm:$0xff]
  %v591 = vld [vmem:[%s4 + $0x8] sm:$0xff]
  %v592 = vld [vmem:[%s4 + $0x10] sm:$0xff]
  %v593 = vld [vmem:[%s4 + $0x18] sm:$0xff]
  %595 = vset.pattern.permute.xlu0 0
  %596 = vperm.xlu0 %595, %v590
  %v597 = vpop.permute.xlu0 %596
  %600 = vset.pattern.permute.xlu0 0
  %601 = vperm.xlu0 %600, %v591
  %v602 = vpop.permute.xlu0 %601
  %605 = vset.pattern.permute.xlu0 0
  %606 = vperm.xlu0 %605, %v592
  %v607 = vpop.permute.xlu0 %606
  %610 = vset.pattern.permute.xlu0 0
  %611 = vperm.xlu0 %610, %v593
  %v612 = vpop.permute.xlu0 %611
  %vm614 = vcmask 261120
  %v616 = vsel %vm614, %v586, 0
  %v619 = vsel %vm614, %v587, 0
  %v622 = vsel %vm614, %v588, 0
  %v625 = vsel %vm614, %v589, 0
  %627 = vmatpush.msra.mxu0 0.0
  %628 = vmatpush.msra.mxu0 0.0
  %629 = vmatpush.msra.mxu0 0.0
  %630 = vmatpush.msra.mxu0 0.0
  %631 = vmatpush.msra.mxu0 0.0
  %632 = vmatpush.msra.mxu0 0.0
  %633 = vmatpush.msra.mxu0 0.0
  %634 = vmatpush.msra.mxu0 0.0
  %635 = vmatpush.msra.mxu0 0.0
  %636 = vmatpush.msra.mxu0 0.0
  %637 = vmatpush.msra.mxu0 0.0
  %638 = vmatpush.msra.mxu0 0.0
  %639 = vmatpush.msra.mxu0 %v585
  %640 = vmatpush.msra.mxu0 %v584
  %641 = vmatpush.msra.mxu0 %v583
  %642 = vmatpush.msra.mxu0 %v582
  %643 = vmatmul.f32.gmra.mxu0 %v616
  %v644 = vpop.f32.mrf.mxu0
  %v645 = vadd.f32 %v597, %v644
  %646 = vmatmul.f32.gmra.mxu0 %v619
  %v647 = vpop.f32.mrf.mxu0
  %v648 = vadd.f32 %v602, %v647
  %649 = vmatmul.f32.gmra.mxu0 %v622
  %v650 = vpop.f32.mrf.mxu0
  %v651 = vadd.f32 %v607, %v650
  %652 = vmatmul.f32.gmra.mxu0 %v625
  %v653 = vpop.f32.mrf.mxu0
  %v654 = vadd.f32 %v612, %v653
  %655 = vdwg.mxu0
  %v656 = vadd.f32 %v645, %v20
  %v657 = vadd.f32 %v648, %v21
  %v658 = vadd.f32 %v651, %v22
  %v659 = vadd.f32 %v654, %v23
  %v660 = vmax.f32 %v656, 0.0
  %v661 = vmax.f32 %v657, 0.0
  %v662 = vmax.f32 %v658, 0.0
  %v663 = vmax.f32 %v659, 0.0
  %664 = vst.msk [vmem:[%s5] sm:$0xff] %vm614, %v660
  %665 = vst.msk [vmem:[%s5 + $0x8] sm:$0xff] %vm614, %v661
  %666 = vst.msk [vmem:[%s5 + $0x10] sm:$0xff] %vm614, %v662
  %667 = vst.msk [vmem:[%s5 + $0x18] sm:$0xff] %vm614, %v663
  // Predicated region
  $region22: #{mgr_forward_pallas.1} parent=0 // pred_check
    _
  $region23: #{mgr_forward_pallas.1} parent=0 // pred_check_branch
    %669 = sbr.rel (0) target = $region25
  $region24: #{mgr_forward_pallas.1} parent=0 // pred_region
    _
  $region25: #{mgr_forward_pallas.1} parent=0 // pred_fallthru
    _
  // Predicated region
  $region26: #{mgr_forward_pallas.1} parent=0 // pred_check
    _
  $region27: #{mgr_forward_pallas.1} parent=0 // pred_check_branch
    %671 = sbr.rel (0) target = $region29
  $region28: #{mgr_forward_pallas.1} parent=0 // pred_region
    _
  $region29: #{mgr_forward_pallas.1} parent=0 // pred_fallthru
    _

</llo_original>
